<compile_context>
chip_gen: v7x
topology: tpu7x:2x2x1
jax: 0.10.0
libtpu: 0.0.40
codegen_flags: <defaults>
</compile_context>

<pallas_src>
import functools

import numpy as np
import jax
import jax.numpy as jnp
from jax.experimental import pallas as pl
from jax.experimental.pallas import tpu as pltpu

_LANES = 128
# 2048 rows x 128 lanes x f32 = 1 MiB per input block; x2 inputs x2 pipeline
# buffers = 4 MiB -> comfortably inside the scoped-VMEM default on v5e (16 MiB),
# v6e (32 MiB) and v7x (32 MiB), while >= 512 rows keeps per-step overhead
# amortized against HBM bandwidth on all three generations.
_TM_MAX = 2048


def _std_kernel(p_ref, l_ref, o_ref, sum_ref, sumsq_ref, *,
                tm, rows_valid, need_row_mask, inv_n):
    """One grid step: accumulate (sum, sumsq) of |p - l|; finalize on last step."""
    i = pl.program_id(0)
    last = pl.num_programs(0) - 1

    @pl.when(i == 0)
    def _():
        sum_ref[...] = jnp.zeros_like(sum_ref)
        sumsq_ref[...] = jnp.zeros_like(sumsq_ref)

    err = jnp.abs(p_ref[...].astype(jnp.float32) - l_ref[...].astype(jnp.float32))

    def accumulate(e):
        sum_ref[...] += jnp.sum(e, keepdims=True)
        sumsq_ref[...] += jnp.sum(e * e, keepdims=True)

    if need_row_mask:
        # Grid does not evenly divide the row count: rows past `rows_valid` in
        # the final tile are unspecified (OOB block read) and must be zeroed.
        # The mask only runs on the last step; all other tiles are mask-free.
        @pl.when(i != last)
        def _():
            accumulate(err)

        @pl.when(i == last)
        def _():
            row = jax.lax.broadcasted_iota(jnp.int32, err.shape, 0) + i * tm
            accumulate(jnp.where(row < rows_valid, err, 0.0))
    else:
        accumulate(err)

    @pl.when(i == last)
    def _():
        # One-pass population variance.  Accumulation is f32; clamp guards the
        # tiny negative values cancellation can produce.  (For std << mean at
        # huge N a shifted / Welford combine would be safer — fine at 1e-5
        # rtol for the sizes this module sees.)
        mean = sum_ref[...] * inv_n
        var = jnp.maximum(sumsq_ref[...] * inv_n - mean * mean, 0.0)
        o_ref[...] = jnp.sqrt(var)


def std_abs_error(preds, labels):
    """Population std (ddof=0) of |preds - labels| over all elements (scalar)."""
    assert preds.shape == labels.shape
    n = int(np.prod(preds.shape))

    p = preds.reshape(-1)
    l = labels.reshape(-1)

    # Lane-dense layout: flatten to (M, 128).  Pad only up to the next
    # multiple of 128 lanes, and only when misaligned (aligned inputs — the
    # common case — incur no extra HBM copy).  Padded lanes are zero in both
    # inputs, so they contribute nothing to sum or sumsq.
    lane_pad = (-n) % _LANES
    if lane_pad:
        p = jnp.pad(p, (0, lane_pad))
        l = jnp.pad(l, (0, lane_pad))
    m_rows = (n + lane_pad) // _LANES
    p2 = p.reshape(m_rows, _LANES)
    l2 = l.reshape(m_rows, _LANES)

    if m_rows <= _TM_MAX:
        tm = m_rows                    # single full-height block (== full dim)
    else:
        tm = _TM_MAX                   # multiple of 8 -> sublane aligned
    grid = pl.cdiv(m_rows, tm)
    need_row_mask = (m_rows % tm) != 0  # partial last tile -> mask OOB rows

    kern = functools.partial(
        _std_kernel, tm=tm, rows_valid=m_rows,
        need_row_mask=need_row_mask, inv_n=1.0 / float(n))

    out = pl.pallas_call(
        kern,
        out_shape=jax.ShapeDtypeStruct((1, 1), jnp.float32),
        grid_spec=pltpu.PrefetchScalarGridSpec(
            num_scalar_prefetch=0,
            grid=(grid,),
            in_specs=[pl.BlockSpec((tm, _LANES), lambda i: (i, 0)),
                      pl.BlockSpec((tm, _LANES), lambda i: (i, 0))],
            out_specs=pl.BlockSpec((1, 1), lambda i: (0, 0)),
            scratch_shapes=[pltpu.VMEM((1, 1), jnp.float32),   # running sum
                            pltpu.VMEM((1, 1), jnp.float32)],  # running sumsq
        ),
        compiler_params=pltpu.CompilerParams(
            dimension_semantics=("arbitrary",),      # reduction axis
            vmem_limit_bytes=32 * 1024 * 1024,
        ),
    )(p2, l2)
    return out[0, 0]


if __name__ == "__main__":
    key = jax.random.PRNGKey(0)
    k1, k2 = jax.random.split(key)
    preds = jax.random.normal(k1, (2, 4, 16, 16), dtype=jnp.float32)
    labels = jax.random.normal(k2, (2, 4, 16, 16), dtype=jnp.float32)

    out = std_abs_error(preds, labels)
    out = jax.block_until_ready(out)

    ref = np.std(np.abs(np.asarray(preds) - np.asarray(labels)))  # ddof=0
    assert out.shape == () and out.dtype == jnp.float32
    np.testing.assert_allclose(np.asarray(out), ref, rtol=1e-5, atol=1e-6)
    print("KERNEL_OK")
</pallas_src>

<mosaic_0001>
module attributes {stable_mosaic.version = 11 : i64} {
  func.func @_std_kernel(%arg0: i32, %arg1: memref<16x128xf32, #tpu.memory_space<vmem>>, %arg2: memref<16x128xf32, #tpu.memory_space<vmem>>, %arg3: memref<1x1xf32, #tpu.memory_space<vmem>>, %arg4: memref<1x1xf32, #tpu.memory_space<vmem>>, %arg5: memref<1x1xf32, #tpu.memory_space<vmem>>) attributes {dimension_semantics = [#tpu.dimension_semantics<arbitrary>], iteration_bounds = array<i64: 1>, scalar_prefetch = 0 : i64, scratch_operands = 2 : i64, tpu.core_type = #tpu.core_type<tc>, window_params = [{transform_indices = @transform_0, window_bounds = array<i64: 16, 128>}, {transform_indices = @transform_1, window_bounds = array<i64: 16, 128>}, {pipeline_mode = #tpu.pipeline_mode<synchronous>, transform_indices = @transform_2, window_bounds = array<i64: 1, 1>}]} {
    %c0_i32 = arith.constant 0 : i32
    %0 = arith.cmpi eq, %arg0, %c0_i32 : i32
    %1 = arith.extui %0 : i1 to i32
    %c0_i32_0 = arith.constant 0 : i32
    %2 = arith.cmpi ne, %1, %c0_i32_0 : i32
    scf.if %2 {
      %cst_15 = arith.constant 0.000000e+00 : f32
      %27 = vector.broadcast %cst_15 : f32 to vector<1x1xf32>
      %c0_16 = arith.constant 0 : index
      %c0_17 = arith.constant 0 : index
      %28 = vector.load %arg4[%c0_16, %c0_17] : memref<1x1xf32, #tpu.memory_space<vmem>>, vector<1x1xf32>
      tpu.vector_store %arg4[%c0_16, %c0_17], %27 {strides = array<i32>} : memref<1x1xf32, #tpu.memory_space<vmem>>, vector<1x1xf32>,
      %cst_18 = arith.constant 0.000000e+00 : f32
      %29 = vector.broadcast %cst_18 : f32 to vector<1x1xf32>
      %c0_19 = arith.constant 0 : index
      %c0_20 = arith.constant 0 : index
      %30 = vector.load %arg5[%c0_19, %c0_20] : memref<1x1xf32, #tpu.memory_space<vmem>>, vector<1x1xf32>
      tpu.vector_store %arg5[%c0_19, %c0_20], %29 {strides = array<i32>} : memref<1x1xf32, #tpu.memory_space<vmem>>, vector<1x1xf32>,
    } else {
    }
    %c0 = arith.constant 0 : index
    %c0_1 = arith.constant 0 : index
    %3 = vector.load %arg1[%c0, %c0_1] : memref<16x128xf32, #tpu.memory_space<vmem>>, vector<16x128xf32>
    %c0_2 = arith.constant 0 : index
    %c0_3 = arith.constant 0 : index
    %4 = vector.load %arg2[%c0_2, %c0_3] : memref<16x128xf32, #tpu.memory_space<vmem>>, vector<16x128xf32>
    %5 = arith.subf %3, %4 : vector<16x128xf32>
    %6 = math.absf %5 : vector<16x128xf32>
    %c0_4 = arith.constant 0 : index
    %c0_5 = arith.constant 0 : index
    %7 = vector.load %arg4[%c0_4, %c0_5] : memref<1x1xf32, #tpu.memory_space<vmem>>, vector<1x1xf32>
    %8 = vector.shape_cast %6 : vector<16x128xf32> to vector<1x16x128xf32>
    %cst = arith.constant dense<0.000000e+00> : vector<1xf32>
    %9 = vector.multi_reduction <add>, %8, %cst [1, 2] : vector<1x16x128xf32> to vector<1xf32>
    %10 = vector.shape_cast %9 : vector<1xf32> to vector<1x1x1xf32>
    %11 = vector.extract %10[0, 0, 0] : f32 from vector<1x1x1xf32>
    %12 = vector.broadcast %11 : f32 to vector<1x1xf32>
    %13 = arith.addf %7, %12 : vector<1x1xf32>
    %c0_6 = arith.constant 0 : index
    %c0_7 = arith.constant 0 : index
    %14 = vector.load %arg4[%c0_6, %c0_7] : memref<1x1xf32, #tpu.memory_space<vmem>>, vector<1x1xf32>
    tpu.vector_store %arg4[%c0_6, %c0_7], %13 {strides = array<i32>} : memref<1x1xf32, #tpu.memory_space<vmem>>, vector<1x1xf32>,
    %c0_8 = arith.constant 0 : index
    %c0_9 = arith.constant 0 : index
    %15 = vector.load %arg5[%c0_8, %c0_9] : memref<1x1xf32, #tpu.memory_space<vmem>>, vector<1x1xf32>
    %16 = arith.mulf %6, %6 : vector<16x128xf32>
    %17 = vector.shape_cast %16 : vector<16x128xf32> to vector<1x16x128xf32>
    %cst_10 = arith.constant dense<0.000000e+00> : vector<1xf32>
    %18 = vector.multi_reduction <add>, %17, %cst_10 [1, 2] : vector<1x16x128xf32> to vector<1xf32>
    %19 = vector.shape_cast %18 : vector<1xf32> to vector<1x1x1xf32>
    %20 = vector.extract %19[0, 0, 0] : f32 from vector<1x1x1xf32>
    %21 = vector.broadcast %20 : f32 to vector<1x1xf32>
    %22 = arith.addf %15, %21 : vector<1x1xf32>
    %c0_11 = arith.constant 0 : index
    %c0_12 = arith.constant 0 : index
    %23 = vector.load %arg5[%c0_11, %c0_12] : memref<1x1xf32, #tpu.memory_space<vmem>>, vector<1x1xf32>
    tpu.vector_store %arg5[%c0_11, %c0_12], %22 {strides = array<i32>} : memref<1x1xf32, #tpu.memory_space<vmem>>, vector<1x1xf32>,
    %c0_i32_13 = arith.constant 0 : i32
    %24 = arith.cmpi eq, %arg0, %c0_i32_13 : i32
    %25 = arith.extui %24 : i1 to i32
    %c0_i32_14 = arith.constant 0 : i32
    %26 = arith.cmpi ne, %25, %c0_i32_14 : i32
    scf.if %26 {
      %c0_15 = arith.constant 0 : index
      %c0_16 = arith.constant 0 : index
      %27 = vector.load %arg4[%c0_15, %c0_16] : memref<1x1xf32, #tpu.memory_space<vmem>>, vector<1x1xf32>
      %cst_17 = arith.constant 4.8828125E-4 : f32
      %28 = vector.broadcast %cst_17 : f32 to vector<1x1xf32>
      %29 = arith.mulf %27, %28 : vector<1x1xf32>
      %c0_18 = arith.constant 0 : index
      %c0_19 = arith.constant 0 : index
      %30 = vector.load %arg5[%c0_18, %c0_19] : memref<1x1xf32, #tpu.memory_space<vmem>>, vector<1x1xf32>
      %cst_20 = arith.constant 4.8828125E-4 : f32
      %31 = vector.broadcast %cst_20 : f32 to vector<1x1xf32>
      %32 = arith.mulf %30, %31 : vector<1x1xf32>
      %33 = arith.mulf %29, %29 : vector<1x1xf32>
      %34 = arith.subf %32, %33 : vector<1x1xf32>
      %cst_21 = arith.constant 0.000000e+00 : f32
      %35 = vector.broadcast %cst_21 : f32 to vector<1x1xf32>
      %36 = arith.maximumf %34, %35 : vector<1x1xf32>
      %37 = math.sqrt %36 : vector<1x1xf32>
      %c0_22 = arith.constant 0 : index
      %c0_23 = arith.constant 0 : index
      %38 = vector.load %arg3[%c0_22, %c0_23] : memref<1x1xf32, #tpu.memory_space<vmem>>, vector<1x1xf32>
      tpu.vector_store %arg3[%c0_22, %c0_23], %37 {strides = array<i32>} : memref<1x1xf32, #tpu.memory_space<vmem>>, vector<1x1xf32>,
    } else {
    }
    return
  }
  func.func @transform_0(%arg0: i32) -> (i32, i32) {
    %c0_i32 = arith.constant 0 : i32
    %c0_i32_0 = arith.constant 0 : i32
    return %arg0, %c0_i32 : i32, i32
  }
  func.func @transform_1(%arg0: i32) -> (i32, i32) {
    %c0_i32 = arith.constant 0 : i32
    %c0_i32_0 = arith.constant 0 : i32
    return %arg0, %c0_i32 : i32, i32
  }
  func.func @transform_2(%arg0: i32) -> (i32, i32) {
    %c0_i32 = arith.constant 0 : i32
    %c0_i32_0 = arith.constant 0 : i32
    %c0_i32_1 = arith.constant 0 : i32
    return %c0_i32, %c0_i32_0 : i32, i32
  }
}

</mosaic_0001>

<llo_original>
// kernel: tpu_custom_call.1
$region0: #{tpu_custom_call.1}
  #allocation0 [shape = 'u32[]', space=smem, size = 0x4, offset = 0x4, fixed_abs, tag = 'smem constant byte address 0x4 - core index']
  #allocation1 [shape = 'u32[144,128]{1,0:T(1,128)}', space=vmem, size = 0x12000, scoped, tag = 'internal scratch']
  #allocation2 [shape = 'f32[1,1]{1,0:T(1,128)}', space=vmem, size = 0x200, scoped, tag = 'scratch operand']
  #allocation3 [shape = 'f32[1,1]{1,0:T(1,128)}', space=vmem, size = 0x200, scoped, tag = 'scratch operand']
  %s0 = inlined_call_operand.hbm [shape: f32[16,128], index: 0, kind: input, shape index: {}]
  %s1 = inlined_call_operand.hbm [shape: f32[16,128], index: 1, kind: input, shape index: {}]
  %s2 = inlined_call_operand.hbm [shape: f32[1,1], index: 2, kind: output, shape index: {}]
  %s3 = sld [smem:[#allocation0]]
  $region34: #{tpu_custom_call.1} parent=0
    _
  %s5 = ssub.s32 1, %s3
  %s6 = scalar_select 0, %s5, %s3
  $region1: #{tpu_custom_call.1} parent=0
    #allocation4 [shape = 'u8[8192]{0}', space=vmem, size = 0x2000, scoped, tag = 'input window, operand 0, single buffered']
    #allocation5 [shape = 's32[1]{0}', space=sflag, size = 0x4, scoped, tag = 'scoped memory for tpu_custom_call.1']
    #allocation6 [shape = 's32[1]{0}', space=sflag, size = 0x4, scoped, tag = 'scoped memory for tpu_custom_call.1']
    #allocation7 [shape = 'u8[8192]{0}', space=vmem, size = 0x2000, scoped, tag = 'input window, operand 1, single buffered']
    #allocation8 [shape = 's32[1]{0}', space=sflag, size = 0x4, scoped, tag = 'scoped memory for tpu_custom_call.1']
    #allocation9 [shape = 'u8[512]{0}', space=vmem, size = 0x400, scoped, tag = 'output window, operand 0, single buffered']
    %7 = vsyncpa [#allocation5], 0
    %8 = vsyncpa [#allocation8], 0
    %9 = vsyncpa [#allocation6], 0
    // Predicated region
    $region2: #{tpu_custom_call.1} parent=1 // pred_check
      _
    $region3: #{tpu_custom_call.1} parent=1 // pred_check_branch
      %11 = sbr.rel (0) target = $region5
    $region4: #{tpu_custom_call.1} parent=1 // pred_region
      %s13 = ssub.s32 256, 256
      %14 = vsyncadd [#allocation5], %s13
      %s15 = sshll.u32 [#allocation4], 4
      %s16 = int_to_ptr.vmem [resolvable:$true] %s15
      %21 = dma.hbm_to_vmem [thread:$0]  %s0, 256, %s16, [#allocation5], 128, 128, 8
    $region5: #{tpu_custom_call.1} parent=1 // pred_fallthru
      _
    // Predicated region
    $region6: #{tpu_custom_call.1} parent=1 // pred_check
      _
    $region7: #{tpu_custom_call.1} parent=1 // pred_check_branch
      %23 = sbr.rel (0) target = $region9
    $region8: #{tpu_custom_call.1} parent=1 // pred_region
      %s25 = ssub.s32 256, 256
      %26 = vsyncadd [#allocation8], %s25
      %s27 = sshll.u32 [#allocation7], 4
      %s28 = int_to_ptr.vmem [resolvable:$true] %s27
      %33 = dma.hbm_to_vmem [thread:$0]  %s1, 256, %s28, [#allocation8], 128, 128, 8
    $region9: #{tpu_custom_call.1} parent=1 // pred_fallthru
      _
    // Predicated region
    $region10: #{tpu_custom_call.1} parent=1 // pred_check
      _
    $region11: #{tpu_custom_call.1} parent=1 // pred_check_branch
      %35 = sbr.rel (0) target = $region13
    $region12: #{tpu_custom_call.1} parent=1 // pred_region
      %36 = dma.done [#allocation5], 256
    $region13: #{tpu_custom_call.1} parent=1 // pred_fallthru
      _
    // Predicated region
    $region14: #{tpu_custom_call.1} parent=1 // pred_check
      _
    $region15: #{tpu_custom_call.1} parent=1 // pred_check_branch
      %38 = sbr.rel (0) target = $region17
    $region16: #{tpu_custom_call.1} parent=1 // pred_region
      %39 = dma.done [#allocation8], 256
    $region17: #{tpu_custom_call.1} parent=1 // pred_fallthru
      _
    %p40 = scmp.eq.s32.totalorder 0, 0
    // Predicated region
    $region18: #{tpu_custom_call.1} parent=1 // pred_check
      %p41 = pneg %p40
    $region19: #{tpu_custom_call.1} parent=1 // pred_check_branch
      %43 = sbr.rel (%p41) target = $region21
    $region20: #{tpu_custom_call.1} parent=1 // pred_region
      %vm44 = vcmask 0
      %45 = vst.msk [vmem:[#allocation2] sm:$0x1] %vm44, 0.0
      %46 = vst.msk [vmem:[#allocation3] sm:$0x1] %vm44, 0.0
    $region21: #{tpu_custom_call.1} parent=1 // pred_fallthru
      _
    %v47 = vld [vmem:[#allocation4] sm:$0xff]
    %v48 = vld [vmem:[#allocation4 + $0x8] sm:$0xff]
    %v49 = vld [vmem:[#allocation7] sm:$0xff]
    %v50 = vld [vmem:[#allocation7 + $0x8] sm:$0xff]
    %v51 = vsub.f32 %v47, %v49
    %v52 = vsub.f32 %v48, %v50
    %v53 = vand.u32 2147483647, %v51
    %v54 = vand.u32 2147483647, %v52
    %v55 = vld [vmem:[#allocation2] sm:$0x1]
    %v56 = vadd.f32 %v53, %v54
    %57 = vadd.xlane.f32.xlu0 %v56
    %v58 = vpop.xlane.xlu0 %57
    %v59 = vrot.slane %v58, 4
    %v60 = vadd.f32 %v58, %v59
    %v61 = vrot.slane %v60, 2
    %v62 = vadd.f32 %v60, %v61
    %v63 = vrot.slane %v62, 1
    %v64 = vadd.f32 %v62, %v63
    %s65 = vtos %v64
    %v66 = vstv %s65
    %v67 = vadd.f32 %v55, %v66
    %vm68 = vcmask 0
    %69 = vst.msk [vmem:[#allocation2] sm:$0x1] %vm68, %v67
    %v70 = vld [vmem:[#allocation3] sm:$0x1]
    %v71 = vmul.f32 %v53, %v53
    %v72 = vmul.f32 %v54, %v54
    %v73 = vadd.f32 %v71, %v72
    %74 = vadd.xlane.f32.xlu0 %v73
    %v75 = vpop.xlane.xlu0 %74
    %v76 = vrot.slane %v75, 4
    %v77 = vadd.f32 %v75, %v76
    %v78 = vrot.slane %v77, 2
    %v79 = vadd.f32 %v77, %v78
    %v80 = vrot.slane %v79, 1
    %v81 = vadd.f32 %v79, %v80
    %s82 = vtos %v81
    %v83 = vstv %s82
    %v84 = vadd.f32 %v70, %v83
    %85 = vst.msk [vmem:[#allocation3] sm:$0x1] %vm68, %v84
    // Predicated region
    $region22: #{tpu_custom_call.1} parent=1 // pred_check
      %p86 = pneg %p40
    $region23: #{tpu_custom_call.1} parent=1 // pred_check_branch
      %88 = sbr.rel (%p86) target = $region25
    $region24: #{tpu_custom_call.1} parent=1 // pred_region
      %v89 = vld [vmem:[#allocation2] sm:$0x1]
      %v90 = vmul.f32 %v89, 0.00048828125
      %v91 = vld [vmem:[#allocation3] sm:$0x1]
      %v92 = vmul.f32 %v91, 0.00048828125
      %v93 = vmul.f32 %v90, %v90
      %v94 = vsub.f32 %v92, %v93
      %v95 = vmax.f32 %v94, 0.0
      %v96 = vrsqrt.pop %v95
      %v97 = vmul.f32 %v95, %v96
      %vm98 = vcmp.eq.f32.partialorder %v95, inf
      %v99 = vsel %vm98, %v95, %v97
      %vm100 = vcmp.eq.f32.partialorder %v95, 0.0
      %v101 = vand.u32 %v95, 2147483648
      %v102 = vsel %vm100, %v101, %v99
      %103 = vst.msk [vmem:[#allocation9] sm:$0x1] %vm68, %v102
    $region25: #{tpu_custom_call.1} parent=1 // pred_fallthru
      _
    // Predicated region
    $region26: #{tpu_custom_call.1} parent=1 // pred_check
      _
    $region27: #{tpu_custom_call.1} parent=1 // pred_check_branch
      %105 = sbr.rel (0) target = $region29
    $region28: #{tpu_custom_call.1} parent=1 // pred_region
      %s107 = ssub.s32 16, 16
      %108 = vsyncadd [#allocation6], %s107
      %s110 = sshll.u32 [#allocation9], 4
      %s111 = int_to_ptr.vmem [resolvable:$true] %s110
      %113 = dma.vmem_to_hbm [thread:$0]  %s111, 16, %s2, [#allocation6]
    $region29: #{tpu_custom_call.1} parent=1 // pred_fallthru
      _
    // Predicated region
    $region30: #{tpu_custom_call.1} parent=1 // pred_check
      _
    $region31: #{tpu_custom_call.1} parent=1 // pred_check_branch
      %115 = sbr.rel (0) target = $region33
    $region32: #{tpu_custom_call.1} parent=1 // pred_region
      %116 = dma.done [#allocation6], 16
    $region33: #{tpu_custom_call.1} parent=1 // pred_fallthru
      _
    %117 = vsyncpa [#allocation5], 1
    %118 = vsyncpa [#allocation8], 1
    %119 = vsyncpa [#allocation6], 1

</llo_original>
